<compile_context>
chip_gen: v7x
topology: tpu7x:2x2x1
jax: 0.10.0
libtpu: 0.0.40
codegen_flags: <defaults>
</compile_context>

<pallas_src>
import functools

import jax
import jax.numpy as jnp
from jax.experimental import pallas as pl
from jax.experimental.pallas import tpu as pltpu

_LANE = 128
_SUBLANE = 8
_CHUNK_ROWS = 64  # rows per in-kernel accumulation chunk (32 KiB f32 / input)


def _psnr_partial_kernel(true_ref, fake_ref, out_ref, *, tr, ch):
    """Writes the (8,128) partial sum of squared clipped diffs for this block."""
    nchunks = tr // ch

    def chunk_sum(c, acc):
        r0 = pl.multiple_of(c * ch, ch)
        t = jnp.clip(true_ref[pl.ds(r0, ch), :].astype(jnp.float32), 0.0, 1.0)
        f = jnp.clip(fake_ref[pl.ds(r0, ch), :].astype(jnp.float32), 0.0, 1.0)
        d = t - f
        d2 = d * d
        # (ch,128) -> (ch/8, 8, 128); sum over axis 0 is pure VPU adds across
        # vregs at matching sublane positions (no cross-lane reduce).
        return acc + jnp.sum(d2.reshape(ch // _SUBLANE, _SUBLANE, _LANE), axis=0)

    if nchunks == 1:
        t = jnp.clip(true_ref[...].astype(jnp.float32), 0.0, 1.0)
        f = jnp.clip(fake_ref[...].astype(jnp.float32), 0.0, 1.0)
        d = t - f
        d2 = d * d
        out_ref[...] = jnp.sum(d2.reshape(tr // _SUBLANE, _SUBLANE, _LANE), axis=0)
    else:
        acc0 = jnp.zeros((_SUBLANE, _LANE), jnp.float32)
        unroll = 2 if (nchunks % 2 == 0) else 1
        out_ref[...] = jax.lax.fori_loop(0, nchunks, chunk_sum, acc0, unroll=unroll)


def _clipped_ssd(t, f):
    """Plain-JAX sum of squared clipped diffs (used for tiny tails / fast path)."""
    d = jnp.clip(t.astype(jnp.float32), 0.0, 1.0) - jnp.clip(
        f.astype(jnp.float32), 0.0, 1.0
    )
    return jnp.sum(d * d)


def psnr_loss(im_true, im_fake, data_range=255.0, row_tile=8192):
    """Global PSNR over all elements of im_true / im_fake (any matching shape)."""
    assert im_true.shape == im_fake.shape
    assert row_tile >= _SUBLANE
    n = im_true.size
    r = jnp.float32(data_range)

    t_flat = im_true.reshape(-1)
    f_flat = im_fake.reshape(-1)

    rows = n // _LANE           # complete 128-lane rows
    rem = n - rows * _LANE      # < 128 leftover elements -> epilogue

    # Small-n fast path: not even one (8,128) block worth of data.
    if rows < _SUBLANE:
        ssd = _clipped_ssd(t_flat, f_flat)
        mse = ssd * (r * r) / jnp.float32(n) + 1e-6
        return 20.0 * jnp.log10(r / jnp.sqrt(mse))

    if rem:
        # Rare case (numel not 128-aligned): one prefix-slice copy is the only
        # way to get a free (rows,128) reshape; the <128-elem tail goes to the
        # epilogue.  No full-array jnp.pad anywhere.
        bulk_t = t_flat[: rows * _LANE]
        bulk_f = f_flat[: rows * _LANE]
    else:
        bulk_t, bulk_f = t_flat, f_flat   # free reshape, zero copies

    t2 = bulk_t.reshape(rows, _LANE)
    f2 = bulk_f.reshape(rows, _LANE)

    # Row-tile selection: big tiles to amortize per-step overhead, grid >= 2
    # when the input is big enough (v7x megacore), 64/32-aligned tr so narrow
    # dtypes keep clean packed layouts.
    tr = min(int(row_tile), rows)
    if rows >= 2 * _CHUNK_ROWS:
        tr = min(tr, rows // 2)
    if tr >= 64:
        tr = (tr // 64) * 64
    elif tr >= 32:
        tr = (tr // 32) * 32
    else:
        tr = max(_SUBLANE, (tr // _SUBLANE) * _SUBLANE)
    grid = rows // tr
    rows_kernel = grid * tr
    ch = min(_CHUNK_ROWS, tr)

    kernel = functools.partial(_psnr_partial_kernel, tr=tr, ch=ch)

    itemsize = jnp.dtype(im_true.dtype).itemsize
    bytes_accessed = (
        2 * rows_kernel * _LANE * itemsize + grid * _SUBLANE * _LANE * 4
    )

    partials = pl.pallas_call(
        kernel,
        out_shape=jax.ShapeDtypeStruct((grid * _SUBLANE, _LANE), jnp.float32),
        grid_spec=pltpu.PrefetchScalarGridSpec(
            num_scalar_prefetch=0,
            grid=(grid,),
            in_specs=[
                pl.BlockSpec((tr, _LANE), lambda i: (i, 0)),
                pl.BlockSpec((tr, _LANE), lambda i: (i, 0)),
            ],
            out_specs=pl.BlockSpec((_SUBLANE, _LANE), lambda i: (i, 0)),
        ),
        compiler_params=pltpu.CompilerParams(
            dimension_semantics=("parallel",),
            vmem_limit_bytes=32 * 1024 * 1024,
        ),
        cost_estimate=pl.CostEstimate(
            flops=7 * rows_kernel * _LANE,
            transcendentals=0,
            bytes_accessed=bytes_accessed,
        ),
    )(t2, f2)

    # Tiny epilogue in plain JAX: leftover rows / sub-128 tail, fold data_range
    # back in, mean, log10.
    ssd = jnp.sum(partials)
    if rows_kernel < rows:
        ssd = ssd + _clipped_ssd(t2[rows_kernel:, :], f2[rows_kernel:, :])
    if rem:
        ssd = ssd + _clipped_ssd(t_flat[rows * _LANE :], f_flat[rows * _LANE :])

    mse = ssd * (r * r) / jnp.float32(n) + 1e-6
    return 20.0 * jnp.log10(r / jnp.sqrt(mse))


def _psnr_ref(im_true, im_fake, data_range=255.0):
    t = jnp.clip(im_true, 0.0, 1.0) * data_range
    f = jnp.clip(im_fake, 0.0, 1.0) * data_range
    mse = jnp.mean((t - f) ** 2) + 1e-6
    return 20.0 * jnp.log10(data_range / jnp.sqrt(mse))


if __name__ == "__main__":
    key = jax.random.PRNGKey(0)
    k1, k2, k3, k4, k5, k6 = jax.random.split(key, 6)

    # Case 1: NCHW images roughly in [0,1] with some out-of-range values so the
    # clamp path is exercised. n = 2048 -> rows = 16, single kernel block.
    x_shape = (2, 4, 16, 16)
    im_true = jax.random.uniform(k1, x_shape, jnp.float32, -0.1, 1.1)
    im_fake = im_true + 0.05 * jax.random.normal(k2, x_shape, jnp.float32)
    out = jax.block_until_ready(psnr_loss(im_true, im_fake, data_range=255.0))
    ref = _psnr_ref(im_true, im_fake, 255.0)
    assert jnp.allclose(out, ref, rtol=1e-4, atol=1e-4), (out, ref)

    # Case 2: n = 3072 -> rows = 24, row_tile=16 -> grid = 1 kernel block plus
    # 8 leftover rows handled by the plain-JAX epilogue (no in-kernel masking).
    y_shape = (2, 3, 16, 32)
    yt = jax.random.uniform(k3, y_shape, jnp.float32, -0.1, 1.1)
    yf = yt + 0.1 * jax.random.normal(k4, y_shape, jnp.float32)
    out2 = jax.block_until_ready(psnr_loss(yt, yf, data_range=255.0, row_tile=16))
    ref2 = _psnr_ref(yt, yf, 255.0)
    assert jnp.allclose(out2, ref2, rtol=1e-4, atol=1e-4), (out2, ref2)

    # Case 3: n = 1690 (not 128-aligned) -> exercises the 128-aligned prefix
    # path + sub-128 remainder in the epilogue.
    z_shape = (2, 5, 13, 13)
    zt = jax.random.uniform(k5, z_shape, jnp.float32, -0.1, 1.1)
    zf = zt + 0.2 * jax.random.normal(k6, z_shape, jnp.float32)
    out3 = jax.block_until_ready(psnr_loss(zt, zf, data_range=255.0))
    ref3 = _psnr_ref(zt, zf, 255.0)
    assert jnp.allclose(out3, ref3, rtol=1e-4, atol=1e-4), (out3, ref3)

    print("KERNEL_OK")
</pallas_src>

<mosaic_0001>
module attributes {stable_mosaic.version = 11 : i64} {
  func.func @_psnr_partial_kernel(%arg0: i32, %arg1: memref<16x128xf32, #tpu.memory_space<vmem>>, %arg2: memref<16x128xf32, #tpu.memory_space<vmem>>, %arg3: memref<8x128xf32, #tpu.memory_space<vmem>>) attributes {dimension_semantics = [#tpu.dimension_semantics<parallel>], iteration_bounds = array<i64: 1>, scalar_prefetch = 0 : i64, scratch_operands = 0 : i64, tpu.core_type = #tpu.core_type<tc>, window_params = [{transform_indices = @transform_0, window_bounds = array<i64: 16, 128>}, {transform_indices = @transform_1, window_bounds = array<i64: 16, 128>}, {transform_indices = @transform_2, window_bounds = array<i64: 8, 128>}]} {
    %c0 = arith.constant 0 : index
    %c0_0 = arith.constant 0 : index
    %0 = vector.load %arg1[%c0, %c0_0] : memref<16x128xf32, #tpu.memory_space<vmem>>, vector<16x128xf32>
    %cst = arith.constant 0.000000e+00 : f32
    %cst_1 = arith.constant 1.000000e+00 : f32
    %1 = vector.broadcast %cst : f32 to vector<16x128xf32>
    %2 = arith.maximumf %1, %0 : vector<16x128xf32>
    %3 = vector.broadcast %cst_1 : f32 to vector<16x128xf32>
    %4 = arith.minimumf %3, %2 : vector<16x128xf32>
    %c0_2 = arith.constant 0 : index
    %c0_3 = arith.constant 0 : index
    %5 = vector.load %arg2[%c0_2, %c0_3] : memref<16x128xf32, #tpu.memory_space<vmem>>, vector<16x128xf32>
    %cst_4 = arith.constant 0.000000e+00 : f32
    %cst_5 = arith.constant 1.000000e+00 : f32
    %6 = vector.broadcast %cst_4 : f32 to vector<16x128xf32>
    %7 = arith.maximumf %6, %5 : vector<16x128xf32>
    %8 = vector.broadcast %cst_5 : f32 to vector<16x128xf32>
    %9 = arith.minimumf %8, %7 : vector<16x128xf32>
    %10 = arith.subf %4, %9 : vector<16x128xf32>
    %11 = arith.mulf %10, %10 : vector<16x128xf32>
    %12 = vector.shape_cast %11 : vector<16x128xf32> to vector<2x8x128xf32>
    %cst_6 = arith.constant dense<0.000000e+00> : vector<8x128xf32>
    %13 = vector.multi_reduction <add>, %12, %cst_6 [0] : vector<2x8x128xf32> to vector<8x128xf32>
    %c0_7 = arith.constant 0 : index
    %c0_8 = arith.constant 0 : index
    %14 = vector.load %arg3[%c0_7, %c0_8] : memref<8x128xf32, #tpu.memory_space<vmem>>, vector<8x128xf32>
    tpu.vector_store %arg3[%c0_7, %c0_8], %13 {strides = array<i32>} : memref<8x128xf32, #tpu.memory_space<vmem>>, vector<8x128xf32>,
    return
  }
  func.func @transform_0(%arg0: i32) -> (i32, i32) {
    %c0_i32 = arith.constant 0 : i32
    %c0_i32_0 = arith.constant 0 : i32
    return %arg0, %c0_i32 : i32, i32
  }
  func.func @transform_1(%arg0: i32) -> (i32, i32) {
    %c0_i32 = arith.constant 0 : i32
    %c0_i32_0 = arith.constant 0 : i32
    return %arg0, %c0_i32 : i32, i32
  }
  func.func @transform_2(%arg0: i32) -> (i32, i32) {
    %c0_i32 = arith.constant 0 : i32
    %c0_i32_0 = arith.constant 0 : i32
    return %arg0, %c0_i32 : i32, i32
  }
}

</mosaic_0001>

<llo_original>
// kernel: tpu_custom_call.1
$region0: #{tpu_custom_call.1}
  #allocation0 [shape = 'u32[]', space=smem, size = 0x4, offset = 0x4, fixed_abs, tag = 'smem constant byte address 0x4 - core index']
  #allocation1 [shape = 'u32[144,128]{1,0:T(1,128)}', space=vmem, size = 0x12000, scoped, tag = 'internal scratch']
  %s0 = inlined_call_operand.hbm [shape: f32[16,128], index: 0, kind: input, shape index: {}]
  %s1 = inlined_call_operand.hbm [shape: f32[16,128], index: 1, kind: input, shape index: {}]
  %s2 = inlined_call_operand.hbm [shape: f32[8,128], index: 2, kind: output, shape index: {}]
  %s3 = sld [smem:[#allocation0]]
  $region26: #{tpu_custom_call.1} parent=0
    _
  %s5 = ssub.s32 1, %s3
  %s6 = scalar_select 0, %s5, %s3
  $region1: #{tpu_custom_call.1} parent=0
    #allocation2 [shape = 'u8[8192]{0}', space=vmem, size = 0x2000, scoped, tag = 'input window, operand 0, single buffered']
    #allocation3 [shape = 's32[1]{0}', space=sflag, size = 0x4, scoped, tag = 'scoped memory for tpu_custom_call.1']
    #allocation4 [shape = 's32[1]{0}', space=sflag, size = 0x4, scoped, tag = 'scoped memory for tpu_custom_call.1']
    #allocation5 [shape = 'u8[8192]{0}', space=vmem, size = 0x2000, scoped, tag = 'input window, operand 1, single buffered']
    #allocation6 [shape = 's32[1]{0}', space=sflag, size = 0x4, scoped, tag = 'scoped memory for tpu_custom_call.1']
    #allocation7 [shape = 'u8[4096]{0}', space=vmem, size = 0x1000, scoped, tag = 'output window, operand 0, single buffered']
    %7 = vsyncpa [#allocation3], 0
    %8 = vsyncpa [#allocation6], 0
    %9 = vsyncpa [#allocation4], 0
    // Predicated region
    $region2: #{tpu_custom_call.1} parent=1 // pred_check
      _
    $region3: #{tpu_custom_call.1} parent=1 // pred_check_branch
      %11 = sbr.rel (0) target = $region5
    $region4: #{tpu_custom_call.1} parent=1 // pred_region
      %s13 = ssub.s32 256, 256
      %14 = vsyncadd [#allocation3], %s13
      %s15 = sshll.u32 [#allocation2], 4
      %s16 = int_to_ptr.vmem [resolvable:$true] %s15
      %21 = dma.hbm_to_vmem [thread:$0]  %s0, 256, %s16, [#allocation3], 128, 128, 8
    $region5: #{tpu_custom_call.1} parent=1 // pred_fallthru
      _
    // Predicated region
    $region6: #{tpu_custom_call.1} parent=1 // pred_check
      _
    $region7: #{tpu_custom_call.1} parent=1 // pred_check_branch
      %23 = sbr.rel (0) target = $region9
    $region8: #{tpu_custom_call.1} parent=1 // pred_region
      %s25 = ssub.s32 256, 256
      %26 = vsyncadd [#allocation6], %s25
      %s27 = sshll.u32 [#allocation5], 4
      %s28 = int_to_ptr.vmem [resolvable:$true] %s27
      %33 = dma.hbm_to_vmem [thread:$0]  %s1, 256, %s28, [#allocation6], 128, 128, 8
    $region9: #{tpu_custom_call.1} parent=1 // pred_fallthru
      _
    // Predicated region
    $region10: #{tpu_custom_call.1} parent=1 // pred_check
      _
    $region11: #{tpu_custom_call.1} parent=1 // pred_check_branch
      %35 = sbr.rel (0) target = $region13
    $region12: #{tpu_custom_call.1} parent=1 // pred_region
      %36 = dma.done [#allocation3], 256
    $region13: #{tpu_custom_call.1} parent=1 // pred_fallthru
      _
    // Predicated region
    $region14: #{tpu_custom_call.1} parent=1 // pred_check
      _
    $region15: #{tpu_custom_call.1} parent=1 // pred_check_branch
      %38 = sbr.rel (0) target = $region17
    $region16: #{tpu_custom_call.1} parent=1 // pred_region
      %39 = dma.done [#allocation6], 256
    $region17: #{tpu_custom_call.1} parent=1 // pred_fallthru
      _
    %v40 = vld [vmem:[#allocation2] sm:$0xff]
    %v41 = vld [vmem:[#allocation2 + $0x8] sm:$0xff]
    %v42 = vmax.f32 %v40, 0.0
    %v43 = vmax.f32 %v41, 0.0
    %v44 = vmin.f32 %v42, 1.0
    %v45 = vmin.f32 %v43, 1.0
    %v46 = vld [vmem:[#allocation5] sm:$0xff]
    %v47 = vld [vmem:[#allocation5 + $0x8] sm:$0xff]
    %v48 = vmax.f32 %v46, 0.0
    %v49 = vmax.f32 %v47, 0.0
    %v50 = vmin.f32 %v48, 1.0
    %v51 = vmin.f32 %v49, 1.0
    %v52 = vsub.f32 %v44, %v50
    %v53 = vsub.f32 %v45, %v51
    %v54 = vmul.f32 %v52, %v52
    %v55 = vmul.f32 %v53, %v53
    %v56 = vadd.f32 %v54, %v55
    %57 = vst [vmem:[#allocation7] sm:$0xff] %v56
    // Predicated region
    $region18: #{tpu_custom_call.1} parent=1 // pred_check
      _
    $region19: #{tpu_custom_call.1} parent=1 // pred_check_branch
      %59 = sbr.rel (0) target = $region21
    $region20: #{tpu_custom_call.1} parent=1 // pred_region
      %s61 = ssub.s32 128, 128
      %62 = vsyncadd [#allocation4], %s61
      %s64 = sshll.u32 [#allocation7], 4
      %s65 = int_to_ptr.vmem [resolvable:$true] %s64
      %67 = dma.vmem_to_hbm [thread:$0]  %s65, 128, %s2, [#allocation4]
    $region21: #{tpu_custom_call.1} parent=1 // pred_fallthru
      _
    // Predicated region
    $region22: #{tpu_custom_call.1} parent=1 // pred_check
      _
    $region23: #{tpu_custom_call.1} parent=1 // pred_check_branch
      %69 = sbr.rel (0) target = $region25
    $region24: #{tpu_custom_call.1} parent=1 // pred_region
      %70 = dma.done [#allocation4], 128
    $region25: #{tpu_custom_call.1} parent=1 // pred_fallthru
      _
    %71 = vsyncpa [#allocation3], 1
    %72 = vsyncpa [#allocation6], 1
    %73 = vsyncpa [#allocation4], 1

</llo_original>
